<compile_context>
chip_gen: v7x
topology: tpu7x:2x2x1
jax: 0.10.0
libtpu: 0.0.40
codegen_flags: <defaults>
</compile_context>

<pallas_src>
import functools

import jax
import jax.numpy as jnp
from jax import lax
from jax.experimental import pallas as pl
from jax.experimental.pallas import tpu as pltpu

LN_EPS = 1e-5
_MIB = 1024 * 1024


def _round_up(x, m):
    return ((x + m - 1) // m) * m


def _vmem_budget_bytes():
    """Per-generation scoped-VMEM budget in bytes."""
    try:
        cap = int(pltpu.get_tpu_info().vmem_capacity_bytes)
    except Exception:
        # Pure feature detection (query unavailable on this build): assume the
        # smallest generation (v7x: 64 MiB per TensorCore).  This never masks
        # kernel failures -- it only picks a conservative default budget.
        cap = 64 * _MIB
    if cap >= 112 * _MIB:
        return 100 * _MIB                       # v5e / v6e: 128 MiB physical
    return max(32 * _MIB, int(cap * 0.84))      # v7x: ~54 MiB of 64


def _ffn_kernel(x_ref, w1_ref, b1_ref, w2_ref, ln_ref, o_ref, *scratch,
                true_d, d_pad, matmul_dtype, n_fk, use_xs, use_acc):
    """Grid = (row_tiles, ffn_chunks); the ffn-chunk axis is the reduction."""
    fk = pl.program_id(1)

    idx = 0
    xs_ref = None
    acc_ref = None
    if use_xs:
        xs_ref = scratch[idx]
        idx += 1
    if use_acc:
        acc_ref = scratch[idx]
        idx += 1

    # x in matmul precision: cast once per row tile, reuse for every ffn chunk.
    if use_xs:
        @pl.when(fk == 0)
        def _():
            xs_ref[...] = x_ref[...].astype(matmul_dtype)
        x_mm = xs_ref[...]
    else:
        x_mm = x_ref[...].astype(matmul_dtype)

    # hidden chunk: h = relu(x @ W1[:, chunk] + b1[chunk])   (f32 accumulation)
    h = jnp.dot(x_mm, w1_ref[...], preferred_element_type=jnp.float32)
    h = jnp.maximum(h + b1_ref[...], 0.0)
    # second projection contribution of this chunk: y = h @ W2[chunk, :]
    y = jnp.dot(h.astype(matmul_dtype), w2_ref[...],
                preferred_element_type=jnp.float32)

    def _epilogue(acc):
        # residual + bias, then LayerNorm over the true model_dim (f32 path).
        b2 = ln_ref[0:1, :]
        gamma = ln_ref[1:2, :]
        beta = ln_ref[2:3, :]
        res = x_ref[...] + acc + b2
        inv_d = 1.0 / float(true_d)
        mean = jnp.sum(res, axis=-1, keepdims=True) * inv_d   # padded lanes are 0
        cen = res - mean
        if d_pad != true_d:
            col = lax.broadcasted_iota(jnp.int32, cen.shape, 1)
            cen_v = jnp.where(col < true_d, cen, 0.0)
        else:
            cen_v = cen
        var = jnp.sum(cen_v * cen_v, axis=-1, keepdims=True) * inv_d
        norm = cen * lax.rsqrt(var + LN_EPS)
        o_ref[...] = (norm * gamma + beta).astype(o_ref.dtype)

    if n_fk == 1:
        # Resident-weight fast path: no accumulator round-trip at all.
        _epilogue(y)
    else:
        # Accumulate into the resident output tile (block index (i, 0) is
        # constant across fk), or into an f32 scratch if the output is not f32.
        tgt = acc_ref if use_acc else o_ref

        @pl.when(fk == 0)
        def _():
            tgt[...] = y

        @pl.when(fk != 0)
        def _():
            tgt[...] += y

        @pl.when(fk == n_fk - 1)
        def _():
            _epilogue(tgt[...])


def positionalwise_ffn(x, w1, b1, w2, b2, gamma, beta, *,
                       matmul_dtype=jnp.bfloat16, out_dtype=None,
                       block_rows=None, block_f=None):
    """Fused per-token FFN + residual + LayerNorm.

    x: [B, L, D].  w1: [D, F], b1: [F], w2: [F, D], b2: [D], gamma/beta: [D].
    Returns [B, L, D] in `out_dtype` (defaults to x.dtype).
    `block_rows` / `block_f` override the automatic tile selection.
    """
    B, L, D = x.shape
    F = w1.shape[1]
    R = B * L

    matmul_dtype = jnp.dtype(matmul_dtype)
    out_dtype = jnp.dtype(x.dtype if out_dtype is None else out_dtype)
    w_bytes = matmul_dtype.itemsize
    o_bytes = out_dtype.itemsize

    d_pad = _round_up(D, 128)
    f_pad = _round_up(F, 128)
    r8 = _round_up(R, 8)

    budget = _vmem_budget_bytes()
    usable = int(budget * 0.9)      # headroom for compiler-internal scratch

    def est_vmem(tm_, tf_, nfk_):
        wbuf = 2  # conservative: assume every pipelined input is double-buffered
        weights = wbuf * 2 * d_pad * tf_ * w_bytes            # W1 + W2 blocks
        params = wbuf * (8 * tf_ + 8 * d_pad) * 4             # b1 (sublane-padded) + LN pack
        acts = wbuf * tm_ * d_pad * (4 + o_bytes)             # x tile + out tile
        temps = tm_ * tf_ * 4 + tm_ * d_pad * 4               # h / y intermediates
        xs = tm_ * d_pad * w_bytes if (nfk_ > 1 and w_bytes < 4) else 0
        acc = tm_ * d_pad * 4 if (nfk_ > 1 and out_dtype != jnp.dtype(jnp.float32)) else 0
        return weights + params + acts + temps + xs + acc

    _TM_CANDS = (1024, 768, 512, 256, 128, 64, 32, 16, 8)     # 256-multiples first

    def pick_tm(tf_, nfk_, cap):
        cands = [t for t in _TM_CANDS if t <= cap] or [max(8, cap)]
        for t in cands:
            if est_vmem(t, tf_, nfk_) <= usable:
                return t
        return None

    def tm_for(tf_, nfk_):
        if block_rows is not None:
            return min(_round_up(block_rows, 8), r8)
        cap = min(r8, 1024)
        if nfk_ == 1 and R > 8:
            # Keep >= 2 row tiles so both v7x TensorCores get work; this is
            # free when the weights are resident (no extra HBM weight traffic).
            cap = min(cap, _round_up((R + 1) // 2, 8))
        return pick_tm(tf_, nfk_, cap)

    # ffn-dim tiling candidates: fully-resident weights first, then chunked.
    if block_f is not None:
        tf_cands = [min(_round_up(block_f, 128), f_pad)]
    else:
        tf_cands = [f_pad] + [t for t in (512, 256, 128) if t < f_pad]

    tm = tf = f_pad2 = n_fk = None
    for tf_try in tf_cands:
        fp2 = _round_up(f_pad, tf_try)
        nfk = fp2 // tf_try
        t = tm_for(tf_try, nfk)
        if t is not None and est_vmem(t, tf_try, nfk) <= usable:
            tm, tf, f_pad2, n_fk = t, tf_try, fp2, nfk
            break
    if tm is None:
        # No configuration met the budget estimate (tiny budget or aggressive
        # user overrides): take the smallest chunked config, rely on headroom.
        tf = tf_cands[-1]
        f_pad2 = _round_up(f_pad, tf)
        n_fk = f_pad2 // tf
        tm = (min(_round_up(block_rows, 8), r8) if block_rows is not None
              else min(r8, 128))

    r_pad = _round_up(R, tm)
    n_rows = r_pad // tm
    use_xs = (n_fk > 1) and (w_bytes < 4)
    use_acc = (n_fk > 1) and (out_dtype != jnp.dtype(jnp.float32))

    # --- operand preparation (zero padding contributes 0 to every sum) -----
    x2 = x.reshape(R, D).astype(jnp.float32)
    if (r_pad, d_pad) != (R, D):
        x2 = jnp.pad(x2, ((0, r_pad - R), (0, d_pad - D)))

    w1p = w1.astype(matmul_dtype)
    w2p = w2.astype(matmul_dtype)
    if (d_pad, f_pad2) != (D, F):
        w1p = jnp.pad(w1p, ((0, d_pad - D), (0, f_pad2 - F)))
        w2p = jnp.pad(w2p, ((0, f_pad2 - F), (0, d_pad - D)))
    b1p = b1.astype(jnp.float32).reshape(1, F)
    if f_pad2 != F:
        b1p = jnp.pad(b1p, ((0, 0), (0, f_pad2 - F)))

    # b2 / gamma / beta packed into a single (8, d_pad) block: one DMA, one
    # sublane-padded pipeline buffer instead of three.
    ln_pack = jnp.zeros((8, d_pad), jnp.float32)
    ln_pack = ln_pack.at[0, :D].set(b2.astype(jnp.float32))
    ln_pack = ln_pack.at[1, :D].set(gamma.astype(jnp.float32))
    ln_pack = ln_pack.at[2, :D].set(beta.astype(jnp.float32))

    scratch_shapes = []
    if use_xs:
        scratch_shapes.append(pltpu.VMEM((tm, d_pad), matmul_dtype))
    if use_acc:
        scratch_shapes.append(pltpu.VMEM((tm, d_pad), jnp.float32))

    # Real streamed traffic: resident weights are fetched once; chunked weights
    # are re-streamed once per row tile.
    weight_passes = 1 if n_fk == 1 else n_rows
    cost = pl.CostEstimate(
        flops=int(4 * r_pad * d_pad * f_pad2),
        transcendentals=int(r_pad),
        bytes_accessed=int(r_pad * d_pad * 4 + r_pad * d_pad * o_bytes
                           + weight_passes * (2 * d_pad * f_pad2 * w_bytes
                                              + f_pad2 * 4)
                           + 8 * d_pad * 4),
    )

    kernel = functools.partial(
        _ffn_kernel, true_d=D, d_pad=d_pad, matmul_dtype=matmul_dtype,
        n_fk=n_fk, use_xs=use_xs, use_acc=use_acc)

    out = pl.pallas_call(
        kernel,
        out_shape=jax.ShapeDtypeStruct((r_pad, d_pad), out_dtype),
        grid_spec=pltpu.PrefetchScalarGridSpec(
            num_scalar_prefetch=0,
            grid=(n_rows, n_fk),
            in_specs=[
                pl.BlockSpec((tm, d_pad), lambda i, k: (i, 0)),    # x row tile
                pl.BlockSpec((d_pad, tf), lambda i, k: (0, k)),    # W1 chunk
                pl.BlockSpec((1, tf),     lambda i, k: (0, k)),    # b1 chunk
                pl.BlockSpec((tf, d_pad), lambda i, k: (k, 0)),    # W2 chunk
                pl.BlockSpec((8, d_pad),  lambda i, k: (0, 0)),    # b2/gamma/beta
            ],
            out_specs=pl.BlockSpec((tm, d_pad), lambda i, k: (i, 0)),
            scratch_shapes=scratch_shapes,
        ),
        compiler_params=pltpu.CompilerParams(
            dimension_semantics=("parallel", "arbitrary"),
            vmem_limit_bytes=int(budget),
        ),
        cost_estimate=cost,
    )(x2, w1p, b1p, w2p, ln_pack)

    if (r_pad, d_pad) != (R, D):
        out = out[:R, :D]
    return out.reshape(B, L, D)


def reference_ffn(x, w1, b1, w2, b2, gamma, beta):
    h = jnp.maximum(x @ w1 + b1, 0.0)
    y = h @ w2 + b2
    res = x + y
    mean = jnp.mean(res, axis=-1, keepdims=True)
    var = jnp.mean((res - mean) ** 2, axis=-1, keepdims=True)
    return (res - mean) / jnp.sqrt(var + LN_EPS) * gamma + beta


if __name__ == "__main__":
    key = jax.random.PRNGKey(0)
    kx, k1, kb1, k2, kb2, kg, kb = jax.random.split(key, 7)

    # Small shapes consistent with the module: [batch, seq_len, model_dim].
    B, L, D, Fdim = 2, 8, 64, 256
    x = jax.random.normal(kx, (B, L, D), dtype=jnp.float32)
    # Conv1d(kernel_size=1) weights are exactly dense [in, out] matrices.
    w1 = jax.random.normal(k1, (D, Fdim), jnp.float32) * (1.0 / jnp.sqrt(D))
    b1 = jax.random.normal(kb1, (Fdim,), jnp.float32) * 0.1
    w2 = jax.random.normal(k2, (Fdim, D), jnp.float32) * (1.0 / jnp.sqrt(Fdim))
    b2 = jax.random.normal(kb2, (D,), jnp.float32) * 0.1
    gamma = 1.0 + 0.1 * jax.random.normal(kg, (D,), jnp.float32)
    beta = 0.1 * jax.random.normal(kb, (D,), jnp.float32)

    ref = reference_ffn(x, w1, b1, w2, b2, gamma, beta)

    # Default fast path: bf16 MXU operands, auto tiling (weights resident at
    # these shapes), f32 accumulation + residual + LayerNorm.
    out = positionalwise_ffn(x, w1, b1, w2, b2, gamma, beta)
    out = jax.block_until_ready(out)
    assert out.shape == (B, L, D) and out.dtype == jnp.float32
    assert jnp.allclose(out, ref, atol=3e-2, rtol=3e-2), "bf16 path mismatch"

    # Chunked / padded path: ragged dims, f32 operands, forced ffn chunking.
    # Exercises LN masking and accumulation into the resident output tile.
    D2, F2 = 48, 320
    xb = jax.random.normal(kx, (B, L, D2), dtype=jnp.float32)
    w1b = jax.random.normal(k1, (D2, F2), jnp.float32) * (1.0 / jnp.sqrt(D2))
    b1b = jax.random.normal(kb1, (F2,), jnp.float32) * 0.1
    w2b = jax.random.normal(k2, (F2, D2), jnp.float32) * (1.0 / jnp.sqrt(F2))
    b2b = jax.random.normal(kb2, (D2,), jnp.float32) * 0.1
    gammab = 1.0 + 0.1 * jax.random.normal(kg, (D2,), jnp.float32)
    betab = 0.1 * jax.random.normal(kb, (D2,), jnp.float32)

    ref2 = reference_ffn(xb, w1b, b1b, w2b, b2b, gammab, betab)
    out2 = positionalwise_ffn(xb, w1b, b1b, w2b, b2b, gammab, betab,
                              matmul_dtype=jnp.float32,
                              block_rows=8, block_f=128)
    out2 = jax.block_until_ready(out2)
    assert out2.shape == (B, L, D2)
    assert jnp.allclose(out2, ref2, atol=3e-2, rtol=3e-2), "chunked path mismatch"

    print("KERNEL_OK")
</pallas_src>

<mosaic_0001>
module attributes {stable_mosaic.version = 11 : i64} {
  func.func @_ffn_kernel(%arg0: i32, %arg1: i32, %arg2: memref<8x128xf32, #tpu.memory_space<vmem>>, %arg3: memref<128x256xbf16, #tpu.memory_space<vmem>>, %arg4: memref<1x256xf32, #tpu.memory_space<vmem>>, %arg5: memref<256x128xbf16, #tpu.memory_space<vmem>>, %arg6: memref<8x128xf32, #tpu.memory_space<vmem>>, %arg7: memref<8x128xf32, #tpu.memory_space<vmem>>) attributes {dimension_semantics = [#tpu.dimension_semantics<parallel>, #tpu.dimension_semantics<arbitrary>], iteration_bounds = array<i64: 2, 1>, scalar_prefetch = 0 : i64, scratch_operands = 0 : i64, tpu.core_type = #tpu.core_type<tc>, window_params = [{transform_indices = @transform_0, window_bounds = array<i64: 8, 128>}, {transform_indices = @transform_1, window_bounds = array<i64: 128, 256>}, {transform_indices = @transform_2, window_bounds = array<i64: 1, 256>}, {transform_indices = @transform_3, window_bounds = array<i64: 256, 128>}, {pipeline_mode = #tpu.pipeline_mode<synchronous>, transform_indices = @transform_4, window_bounds = array<i64: 8, 128>}, {transform_indices = @transform_5, window_bounds = array<i64: 8, 128>}]} {
    %c0 = arith.constant 0 : index
    %c0_0 = arith.constant 0 : index
    %0 = vector.load %arg2[%c0, %c0_0] : memref<8x128xf32, #tpu.memory_space<vmem>>, vector<8x128xf32>
    %1 = arith.truncf %0 : vector<8x128xf32> to vector<8x128xbf16>
    %c0_1 = arith.constant 0 : index
    %c0_2 = arith.constant 0 : index
    %2 = vector.load %arg3[%c0_1, %c0_2] : memref<128x256xbf16, #tpu.memory_space<vmem>>, vector<128x256xbf16>
    %cst = arith.constant dense<0.000000e+00> : vector<8x256xf32>
    %3 = tpu.matmul %1, %2, %cst {dimension_numbers = #tpu.dot_dimension_numbers<[1], [0], [0], [1], [0, 0, 1, 1], [], []>} : vector<8x128xbf16>, vector<128x256xbf16>, vector<8x256xf32> -> vector<8x256xf32>
    %c0_3 = arith.constant 0 : index
    %c0_4 = arith.constant 0 : index
    %4 = vector.load %arg4[%c0_3, %c0_4] : memref<1x256xf32, #tpu.memory_space<vmem>>, vector<1x256xf32>
    %5 = vector.broadcast %4 : vector<1x256xf32> to vector<8x256xf32>
    %6 = arith.addf %3, %5 : vector<8x256xf32>
    %cst_5 = arith.constant 0.000000e+00 : f32
    %7 = vector.broadcast %cst_5 : f32 to vector<8x256xf32>
    %8 = arith.maximumf %6, %7 : vector<8x256xf32>
    %9 = arith.truncf %8 : vector<8x256xf32> to vector<8x256xbf16>
    %c0_6 = arith.constant 0 : index
    %c0_7 = arith.constant 0 : index
    %10 = vector.load %arg5[%c0_6, %c0_7] : memref<256x128xbf16, #tpu.memory_space<vmem>>, vector<256x128xbf16>
    %cst_8 = arith.constant dense<0.000000e+00> : vector<8x128xf32>
    %11 = tpu.matmul %9, %10, %cst_8 {dimension_numbers = #tpu.dot_dimension_numbers<[1], [0], [0], [1], [0, 0, 1, 1], [], []>} : vector<8x256xbf16>, vector<256x128xbf16>, vector<8x128xf32> -> vector<8x128xf32>
    %c0_9 = arith.constant 0 : index
    %c0_10 = arith.constant 0 : index
    %12 = vector.load %arg6[%c0_9, %c0_10] : memref<8x128xf32, #tpu.memory_space<vmem>>, vector<1x128xf32>
    %c1 = arith.constant 1 : index
    %c0_11 = arith.constant 0 : index
    %13 = vector.load %arg6[%c1, %c0_11] : memref<8x128xf32, #tpu.memory_space<vmem>>, vector<1x128xf32>
    %c2 = arith.constant 2 : index
    %c0_12 = arith.constant 0 : index
    %14 = vector.load %arg6[%c2, %c0_12] : memref<8x128xf32, #tpu.memory_space<vmem>>, vector<1x128xf32>
    %c0_13 = arith.constant 0 : index
    %c0_14 = arith.constant 0 : index
    %15 = vector.load %arg2[%c0_13, %c0_14] : memref<8x128xf32, #tpu.memory_space<vmem>>, vector<8x128xf32>
    %16 = arith.addf %15, %11 : vector<8x128xf32>
    %17 = vector.broadcast %12 : vector<1x128xf32> to vector<8x128xf32>
    %18 = arith.addf %16, %17 : vector<8x128xf32>
    %cst_15 = arith.constant dense<0.000000e+00> : vector<8xf32>
    %19 = vector.multi_reduction <add>, %18, %cst_15 [1] : vector<8x128xf32> to vector<8xf32>
    %20 = vector.shape_cast %19 : vector<8xf32> to vector<8x1xf32>
    %cst_16 = arith.constant 1.562500e-02 : f32
    %21 = vector.broadcast %cst_16 : f32 to vector<8x1xf32>
    %22 = arith.mulf %20, %21 : vector<8x1xf32>
    %23 = vector.broadcast %22 : vector<8x1xf32> to vector<8x128xf32>
    %24 = arith.subf %18, %23 : vector<8x128xf32>
    %25 = tpu.iota {dimensions = array<i32: 1>} : vector<8x128xi32>
    %c64_i32 = arith.constant 64 : i32
    %26 = vector.broadcast %c64_i32 : i32 to vector<8x128xi32>
    %27 = arith.cmpi slt, %25, %26 : vector<8x128xi32>
    %cst_17 = arith.constant 0.000000e+00 : f32
    %28 = vector.broadcast %cst_17 : f32 to vector<8x128xf32>
    %29 = arith.select %27, %24, %28 : vector<8x128xi1>, vector<8x128xf32>
    %30 = arith.mulf %29, %29 : vector<8x128xf32>
    %cst_18 = arith.constant dense<0.000000e+00> : vector<8xf32>
    %31 = vector.multi_reduction <add>, %30, %cst_18 [1] : vector<8x128xf32> to vector<8xf32>
    %32 = vector.shape_cast %31 : vector<8xf32> to vector<8x1xf32>
    %cst_19 = arith.constant 1.562500e-02 : f32
    %33 = vector.broadcast %cst_19 : f32 to vector<8x1xf32>
    %34 = arith.mulf %32, %33 : vector<8x1xf32>
    %cst_20 = arith.constant 9.99999974E-6 : f32
    %35 = vector.broadcast %cst_20 : f32 to vector<8x1xf32>
    %36 = arith.addf %34, %35 : vector<8x1xf32>
    %37 = math.rsqrt %36 : vector<8x1xf32>
    %38 = vector.broadcast %37 : vector<8x1xf32> to vector<8x128xf32>
    %39 = arith.mulf %24, %38 : vector<8x128xf32>
    %40 = vector.broadcast %13 : vector<1x128xf32> to vector<8x128xf32>
    %41 = arith.mulf %39, %40 : vector<8x128xf32>
    %42 = vector.broadcast %14 : vector<1x128xf32> to vector<8x128xf32>
    %43 = arith.addf %41, %42 : vector<8x128xf32>
    %c0_21 = arith.constant 0 : index
    %c0_22 = arith.constant 0 : index
    %44 = vector.load %arg7[%c0_21, %c0_22] : memref<8x128xf32, #tpu.memory_space<vmem>>, vector<8x128xf32>
    tpu.vector_store %arg7[%c0_21, %c0_22], %43 {strides = array<i32>} : memref<8x128xf32, #tpu.memory_space<vmem>>, vector<8x128xf32>,
    return
  }
  func.func @transform_0(%arg0: i32, %arg1: i32) -> (i32, i32) {
    %c0_i32 = arith.constant 0 : i32
    %c0_i32_0 = arith.constant 0 : i32
    return %arg0, %c0_i32 : i32, i32
  }
  func.func @transform_1(%arg0: i32, %arg1: i32) -> (i32, i32) {
    %c0_i32 = arith.constant 0 : i32
    %c0_i32_0 = arith.constant 0 : i32
    return %c0_i32, %arg1 : i32, i32
  }
  func.func @transform_2(%arg0: i32, %arg1: i32) -> (i32, i32) {
    %c0_i32 = arith.constant 0 : i32
    %c0_i32_0 = arith.constant 0 : i32
    return %c0_i32, %arg1 : i32, i32
  }
  func.func @transform_3(%arg0: i32, %arg1: i32) -> (i32, i32) {
    %c0_i32 = arith.constant 0 : i32
    %c0_i32_0 = arith.constant 0 : i32
    return %arg1, %c0_i32 : i32, i32
  }
  func.func @transform_4(%arg0: i32, %arg1: i32) -> (i32, i32) {
    %c0_i32 = arith.constant 0 : i32
    %c0_i32_0 = arith.constant 0 : i32
    %c0_i32_1 = arith.constant 0 : i32
    return %c0_i32, %c0_i32_0 : i32, i32
  }
  func.func @transform_5(%arg0: i32, %arg1: i32) -> (i32, i32) {
    %c0_i32 = arith.constant 0 : i32
    %c0_i32_0 = arith.constant 0 : i32
    return %arg0, %c0_i32 : i32, i32
  }
}

</mosaic_0001>

<llo_original>
// kernel: tpu_custom_call.1
$region0: #{tpu_custom_call.1}
  #allocation0 [shape = 'u32[]', space=smem, size = 0x4, offset = 0x4, fixed_abs, tag = 'smem constant byte address 0x4 - core index']
  #allocation1 [shape = 'u32[144,128]{1,0:T(1,128)}', space=vmem, size = 0x12000, scoped, tag = 'internal scratch']
  %s0 = inlined_call_operand.hbm [shape: f32[16,128], index: 0, kind: input, shape index: {}]
  %s1 = inlined_call_operand.hbm [shape: bf16[128,256], index: 1, kind: input, shape index: {}]
  %s2 = inlined_call_operand.vmem [shape: f32[1,256], index: 2, kind: input, shape index: {}]
  %s3 = inlined_call_operand.hbm [shape: bf16[256,128], index: 3, kind: input, shape index: {}]
  %s4 = inlined_call_operand.vmem [shape: f32[8,128], index: 4, kind: input, shape index: {}]
  %s5 = inlined_call_operand.hbm [shape: f32[16,128], index: 5, kind: output, shape index: {}]
  %s6 = sld [smem:[#allocation0]]
  $region65: #{tpu_custom_call.1} parent=0
    _
  %s8 = ssub.s32 1, %s6
  %s9 = scalar_select 0, %s8, %s6
  $region1: #{tpu_custom_call.1} parent=0
    #allocation2 [shape = 'u8[8192]{0}', space=vmem, size = 0x2000, scoped, tag = 'input window, operand 0']
    #allocation3 [shape = 's32[2]{0}', space=sflag, size = 0x8, scoped, tag = 'scoped memory for tpu_custom_call.1']
    #allocation4 [shape = 's32[2]{0}', space=sflag, size = 0x8, scoped, tag = 'scoped memory for tpu_custom_call.1']
    #allocation5 [shape = 'u8[65536]{0}', space=vmem, size = 0x10000, scoped, tag = 'input window, operand 1, single buffered']
    #allocation6 [shape = 's32[1]{0}', space=sflag, size = 0x4, scoped, tag = 'scoped memory for tpu_custom_call.1']
    #allocation7 [shape = 'u8[65536]{0}', space=vmem, size = 0x10000, scoped, tag = 'input window, operand 3, single buffered']
    #allocation8 [shape = 'u8[8192]{0}', space=vmem, size = 0x2000, scoped, tag = 'output window, operand 0']
    %10 = vsyncpa [#allocation3], 0
    %s11 = scalar_lea.sflag [#allocation3], 1
    %12 = vsyncpa %s11, 0
    %13 = vsyncpa [#allocation6], 0
    %14 = vsyncpa [#allocation4], 0
    %s15 = scalar_lea.sflag [#allocation4], 1
    %16 = vsyncpa %s15, 0
    loop: start=0, step=1, limit=4
    $region2: #{tpu_custom_call.1} parent=1 // loop_pre_header
      _
    $region3: #{tpu_custom_call.1} parent=1 // loop_header
      %s18 = sphi 0, %s22
      %p19 = scmp.ge.s32.totalorder %s18, 4
      %s25 = sphi 0, %s37
      %s26 = sphi 0, %s33
      %s27 = sphi 0, %s25
      %s28 = sphi 0, %s26
      %s29 = sphi 0, %s27
      %s30 = sphi 0, %s28
      %s40 = sphi 0, %s42
      %s43 = sphi 0, %s40
      %s44 = sphi 0, %s43
      %s60 = sphi 0, %s44
      %s66 = sphi 0, %s68
      %s69 = sphi 0, %s66
      %s70 = sphi 0, %s69
      %s86 = sphi 0, %s70
      %s92 = sphi 0, %s94
      %s95 = sphi 0, %s92
      %s96 = sphi 0, %s95
      %s112 = sphi 0, %s96
      %s118 = sphi 0, %s120
      %s121 = sphi 0, %s118
      %s122 = sphi 0, %s121
      %s138 = sphi 0, %s122
      %s142 = sphi 0, %s142
      %s144 = sphi 0, %s142
      %s145 = sphi 0, %s144
      %s159 = sphi 0, %s145
      %s165 = sphi 0, %s167
      %s168 = sphi 0, %s165
      %s169 = sphi 0, %s168
      %s185 = sphi 0, %s169
    $region4: #{tpu_custom_call.1} parent=1 // loop_header_branch
      %21 = sbr.rel (%p19) target = $region8
    $region5: #{tpu_custom_call.1} parent=1 // loop_body
      %s23 = ssub.s32 %s18, 1
      %s24 = ssub.s32 %s18, 2
      %s31 = sadd.s32 1, %s26
      %p32 = scmp.ge.s32.totalorder %s31, 1
      %s33 = scalar_select %p32, 0, %s31
      %s34 = sadd.s32 1, %s25
      %s35 = scalar_select %p32, %s34, %s25
      %p36 = scmp.ge.s32.totalorder %s35, 2
      %s37 = scalar_select %p36, 0, %s35
      %s38 = ssub.s32 %s25, %s37
      %p39 = scmp.eq.s32.totalorder %s38, 0
      %s41 = sadd.s32 %s40, 1
      %s42 = scalar_select %p39, %s40, %s41
      %p45 = pneg %p39
      %p46 = scmp.eq.s32.totalorder %s18, 1
      %p47 = por %p45, %p46
      %p48 = scmp.ne.s32.totalorder %s40, %s43
      %p49 = scmp.eq.s32.totalorder %s18, 0
      %p50 = por %p48, %p49
      %p51 = scmp.ne.s32.totalorder %s40, %s43
      %p52 = scmp.eq.s32.totalorder %s23, 1
      %p53 = por %p51, %p52
      %p54 = scmp.ne.s32.totalorder %s43, %s44
      %p55 = scmp.eq.s32.totalorder %s23, 0
      %p56 = por %p54, %p55
      %p57 = scmp.ne.s32.totalorder %s43, %s44
      %p58 = scmp.eq.s32.totalorder %s24, 1
      %p59 = por %p57, %p58
      %p61 = scmp.ne.s32.totalorder %s44, %s60
      %p62 = scmp.eq.s32.totalorder %s24, 0
      %p63 = por %p61, %p62
      %s64 = ssub.s32 %s26, %s33
      %p65 = scmp.eq.s32.totalorder %s64, 0
      %s67 = sadd.s32 %s66, 1
      %s68 = scalar_select %p65, %s66, %s67
      %p71 = pneg %p65
      %p72 = scmp.eq.s32.totalorder %s18, 1
      %p73 = por %p71, %p72
      %p74 = scmp.ne.s32.totalorder %s66, %s69
      %p75 = scmp.eq.s32.totalorder %s18, 0
      %p76 = por %p74, %p75
      %p77 = scmp.ne.s32.totalorder %s66, %s69
      %p78 = scmp.eq.s32.totalorder %s23, 1
      %p79 = por %p77, %p78
      %p80 = scmp.ne.s32.totalorder %s69, %s70
      %p81 = scmp.eq.s32.totalorder %s23, 0
      %p82 = por %p80, %p81
      %p83 = scmp.ne.s32.totalorder %s69, %s70
      %p84 = scmp.eq.s32.totalorder %s24, 1
      %p85 = por %p83, %p84
      %p87 = scmp.ne.s32.totalorder %s70, %s86
      %p88 = scmp.eq.s32.totalorder %s24, 0
      %p89 = por %p87, %p88
      %s90 = ssub.s32 %s26, %s33
      %p91 = scmp.eq.s32.totalorder %s90, 0
      %s93 = sadd.s32 %s92, 1
      %s94 = scalar_select %p91, %s92, %s93
      %p97 = pneg %p91
      %p98 = scmp.eq.s32.totalorder %s18, 1
      %p99 = por %p97, %p98
      %p100 = scmp.ne.s32.totalorder %s92, %s95
      %p101 = scmp.eq.s32.totalorder %s18, 0
      %p102 = por %p100, %p101
      %p103 = scmp.ne.s32.totalorder %s92, %s95
      %p104 = scmp.eq.s32.totalorder %s23, 1
      %p105 = por %p103, %p104
      %p106 = scmp.ne.s32.totalorder %s95, %s96
      %p107 = scmp.eq.s32.totalorder %s23, 0
      %p108 = por %p106, %p107
      %p109 = scmp.ne.s32.totalorder %s95, %s96
      %p110 = scmp.eq.s32.totalorder %s24, 1
      %p111 = por %p109, %p110
      %p113 = scmp.ne.s32.totalorder %s96, %s112
      %p114 = scmp.eq.s32.totalorder %s24, 0
      %p115 = por %p113, %p114
      %s116 = ssub.s32 %s26, %s33
      %p117 = scmp.eq.s32.totalorder %s116, 0
      %s119 = sadd.s32 %s118, 1
      %s120 = scalar_select %p117, %s118, %s119
      %p123 = pneg %p117
      %p124 = scmp.eq.s32.totalorder %s18, 1
      %p125 = por %p123, %p124
      %p126 = scmp.ne.s32.totalorder %s118, %s121
      %p127 = scmp.eq.s32.totalorder %s18, 0
      %p128 = por %p126, %p127
      %p129 = scmp.ne.s32.totalorder %s118, %s121
      %p130 = scmp.eq.s32.totalorder %s23, 1
      %p131 = por %p129, %p130
      %p132 = scmp.ne.s32.totalorder %s121, %s122
      %p133 = scmp.eq.s32.totalorder %s23, 0
      %p134 = por %p132, %p133
      %p135 = scmp.ne.s32.totalorder %s121, %s122
      %p136 = scmp.eq.s32.totalorder %s24, 1
      %p137 = por %p135, %p136
      %p139 = scmp.ne.s32.totalorder %s122, %s138
      %p140 = scmp.eq.s32.totalorder %s24, 0
      %p141 = por %p139, %p140
      %s143 = sadd.s32 %s142, 1
      %p146 = scmp.eq.s32.totalorder %s18, 1
      %p147 = scmp.ne.s32.totalorder %s142, %s144
      %p148 = scmp.eq.s32.totalorder %s18, 0
      %p149 = por %p147, %p148
      %p150 = scmp.ne.s32.totalorder %s142, %s144
      %p151 = scmp.eq.s32.totalorder %s23, 1
      %p152 = por %p150, %p151
      %p153 = scmp.ne.s32.totalorder %s144, %s145
      %p154 = scmp.eq.s32.totalorder %s23, 0
      %p155 = por %p153, %p154
      %p156 = scmp.ne.s32.totalorder %s144, %s145
      %p157 = scmp.eq.s32.totalorder %s24, 1
      %p158 = por %p156, %p157
      %p160 = scmp.ne.s32.totalorder %s145, %s159
      %p161 = scmp.eq.s32.totalorder %s24, 0
      %p162 = por %p160, %p161
      %s163 = ssub.s32 %s25, %s37
      %p164 = scmp.eq.s32.totalorder %s163, 0
      %s166 = sadd.s32 %s165, 1
      %s167 = scalar_select %p164, %s165, %s166
      %p170 = pneg %p164
      %p171 = scmp.eq.s32.totalorder %s18, 1
      %p172 = por %p170, %p171
      %p173 = scmp.ne.s32.totalorder %s165, %s168
      %p174 = scmp.eq.s32.totalorder %s18, 0
      %p175 = por %p173, %p174
      %p176 = scmp.ne.s32.totalorder %s165, %s168
      %p177 = scmp.eq.s32.totalorder %s23, 1
      %p178 = por %p176, %p177
      %p179 = scmp.ne.s32.totalorder %s168, %s169
      %p180 = scmp.eq.s32.totalorder %s23, 0
      %p181 = por %p179, %p180
      %p182 = scmp.ne.s32.totalorder %s168, %s169
      %p183 = scmp.eq.s32.totalorder %s24, 1
      %p184 = por %p182, %p183
      %p186 = scmp.ne.s32.totalorder %s169, %s185
      %p187 = scmp.eq.s32.totalorder %s24, 0
      %p188 = por %p186, %p187
      %p189 = scmp.le.s32.totalorder 1, %s18
      %p190 = scmp.lt.s32.totalorder %s18, 3
      %p191 = pnand %p189, %p190
      %p192 = pneg %p191
      // Predicated region
      $region9: #{tpu_custom_call.1} parent=5 // pred_check
        _
      $region10: #{tpu_custom_call.1} parent=5 // pred_check_branch
        %194 = sbr.rel (%p191) target = $region12
      $region11: #{tpu_custom_call.1} parent=5 // pred_region
        %s195 = ssub.s32 %s18, 1
        // Predicated region
        $region13: #{tpu_custom_call.1} parent=11 // pred_check
          %p196 = pneg %p82
        $region14: #{tpu_custom_call.1} parent=11 // pred_check_branch
          %198 = sbr.rel (%p196) target = $region16
        $region15: #{tpu_custom_call.1} parent=11 // pred_region
          %s199 = smul.u32 2, %s28
          %s201 = ssub.s32 2048, 2048
          %202 = vsyncadd [#allocation6], %s201
          %s203 = smul.addr %s199, 64
          %s204 = scalar_lea.hbm %s1, %s203
          %s205 = sshll.u32 [#allocation5], 4
          %s206 = int_to_ptr.vmem [resolvable:$true] %s205
          %211 = dma.hbm_to_vmem [thread:$0]  %s204, 2048, %s206, [#allocation6], 128, 128, 8
        $region16: #{tpu_custom_call.1} parent=11 // pred_fallthru
          _
        // Predicated region
        $region17: #{tpu_custom_call.1} parent=11 // pred_check
          %p212 = pneg %p108
        $region18: #{tpu_custom_call.1} parent=11 // pred_check_branch
          %214 = sbr.rel (%p212) target = $region20
        $region19: #{tpu_custom_call.1} parent=11 // pred_region
          %s215 = smul.u32 2, %s28
          %p216 = scmp.lt.s32.totalorder %s215, 1
          %s217 = scalar_select %p216, %s215, 1
          %s218 = scalar_lea.vmem %s2, %s217
          %s219 = smul.u32 2, %s28
        $region20: #{tpu_custom_call.1} parent=11 // pred_fallthru
          _
        // Predicated region
        $region21: #{tpu_custom_call.1} parent=11 // pred_check
          %p220 = pneg %p134
        $region22: #{tpu_custom_call.1} parent=11 // pred_check_branch
          %222 = sbr.rel (%p220) target = $region24
        $region23: #{tpu_custom_call.1} parent=11 // pred_region
          %s223 = smul.u32 32, %s28
          %s225 = ssub.s32 2048, 2048
          %226 = vsyncadd [#allocation6], %s225
          %s227 = smul.addr %s223, 64
          %s228 = scalar_lea.hbm %s3, %s227
          %s229 = sshll.u32 [#allocation7], 4
          %s230 = int_to_ptr.vmem [resolvable:$true] %s229
          %235 = dma.hbm_to_vmem [thread:$0]  %s228, 2048, %s230, [#allocation6], 64, 64, 4
        $region24: #{tpu_custom_call.1} parent=11 // pred_fallthru
          _
        // Predicated region
        $region25: #{tpu_custom_call.1} parent=11 // pred_check
          %p236 = pneg %p155
        $region26: #{tpu_custom_call.1} parent=11 // pred_check_branch
          %238 = sbr.rel (%p236) target = $region28
        $region27: #{tpu_custom_call.1} parent=11 // pred_region
          _
        $region28: #{tpu_custom_call.1} parent=11 // pred_fallthru
          _
      $region12: #{tpu_custom_call.1} parent=5 // pred_fallthru
        _
      %p239 = scmp.lt.s32.totalorder %s18, 2
      // Predicated region
      $region29: #{tpu_custom_call.1} parent=5 // pred_check
        %p240 = pneg %p239
      $region30: #{tpu_custom_call.1} parent=5 // pred_check_branch
        %242 = sbr.rel (%p240) target = $region32
      $region31: #{tpu_custom_call.1} parent=5 // pred_region
        // Predicated region
        $region33: #{tpu_custom_call.1} parent=31 // pred_check
          %p243 = pneg %p50
        $region34: #{tpu_custom_call.1} parent=31 // pred_check_branch
          %245 = sbr.rel (%p243) target = $region36
        $region35: #{tpu_custom_call.1} parent=31 // pred_region
          %s246 = sand.u32 %s40, 1
          %s247 = scalar_lea.sflag [#allocation3], %s246
          %s248 = sand.u32 %s40, 1
          %s249 = smul.addr %s248, 8
          %s250 = scalar_lea.vmem [#allocation2], %s249
          %s252 = ssub.s32 128, 128
          %253 = vsyncadd %s247, %s252
          %s254 = smul.addr %s25, 128
          %s255 = scalar_lea.hbm %s0, %s254
          %s257 = sshll.u32 %s250, 4
          %s258 = int_to_ptr.vmem [resolvable:$true] %s257
          %260 = dma.hbm_to_vmem [thread:$0]  %s255, 128, %s258, %s247
        $region36: #{tpu_custom_call.1} parent=31 // pred_fallthru
          _
      $region32: #{tpu_custom_call.1} parent=5 // pred_fallthru
        _
      %p261 = scmp.le.s32.totalorder 1, %s18
      %p262 = scmp.lt.s32.totalorder %s18, 3
      %p263 = pnand %p261, %p262
      %p264 = pneg %p263
      // Predicated region
      $region37: #{tpu_custom_call.1} parent=5 // pred_check
        _
      $region38: #{tpu_custom_call.1} parent=5 // pred_check_branch
        %266 = sbr.rel (%p263) target = $region40
      $region39: #{tpu_custom_call.1} parent=5 // pred_region
        %s267 = ssub.s32 %s18, 1
        %s268 = sand.u32 %s43, 1
        %s269 = scalar_lea.sflag [#allocation3], %s268
        %s270 = sand.u32 %s43, 1
        %s271 = smul.addr %s270, 8
        %s272 = scalar_lea.vmem [#allocation2], %s271
        // Predicated region
        $region41: #{tpu_custom_call.1} parent=39 // pred_check
          %p273 = pneg %p56
        $region42: #{tpu_custom_call.1} parent=39 // pred_check_branch
          %275 = sbr.rel (%p273) target = $region44
        $region43: #{tpu_custom_call.1} parent=39 // pred_region
          %276 = dma.done %s269, 128
        $region44: #{tpu_custom_call.1} parent=39 // pred_fallthru
          _
        // Predicated region
        $region45: #{tpu_custom_call.1} parent=39 // pred_check
          %p277 = pneg %p82
        $region46: #{tpu_custom_call.1} parent=39 // pred_check_branch
          %279 = sbr.rel (%p277) target = $region48
        $region47: #{tpu_custom_call.1} parent=39 // pred_region
          %280 = dma.done [#allocation6], 2048
        $region48: #{tpu_custom_call.1} parent=39 // pred_fallthru
          _
        // Predicated region
        $region49: #{tpu_custom_call.1} parent=39 // pred_check
          %p281 = pneg %p134
        $region50: #{tpu_custom_call.1} parent=39 // pred_check_branch
          %283 = sbr.rel (%p281) target = $region52
        $region51: #{tpu_custom_call.1} parent=39 // pred_region
          %284 = dma.done [#allocation6], 2048
        $region52: #{tpu_custom_call.1} parent=39 // pred_fallthru
          _
        %s285 = sand.u32 %s43, 1
        %s286 = scalar_lea.sflag [#allocation3], %s285
        %s287 = sand.u32 %s43, 1
        %s288 = smul.addr %s287, 8
        %s289 = scalar_lea.vmem [#allocation2], %s288
        %p290 = pneg %p56
        %p291 = pneg %p53
        %p292 = pneg %p82
        %p293 = pneg %p79
        %s294 = smul.u32 2, %s28
        %p295 = scmp.lt.s32.totalorder %s294, 1
        %s296 = scalar_select %p295, %s294, 1
        %s297 = scalar_lea.vmem %s2, %s296
        %p298 = pneg %p108
        %p299 = pneg %p105
        %p300 = pneg %p134
        %p301 = pneg %p131
        %p302 = pneg %p155
        %p303 = pneg %p152
        %p304 = pneg %p181
        %p305 = pneg %p178
        %s306 = sand.u32 %s168, 1
        %s307 = scalar_lea.sflag [#allocation4], %s306
        %s308 = sand.u32 %s168, 1
        %s309 = smul.addr %s308, 8
        %s310 = scalar_lea.vmem [#allocation8], %s309
        %s311 = smul.u32 2, %s28
        %s312 = smul.u32 2, %s28
        %p313 = scmp.lt.s32.totalorder %s312, 1
        %s314 = scalar_select %p313, %s312, 1
        %s315 = scalar_lea.vmem %s2, %s314
        %s316 = smul.u32 2, %s28
        %s317 = smul.u32 32, %s28
        %v319 = vld [vmem:[%s272] sm:$0xff]
        %v320 = vpack.c.bf16 %v319, %v319
        %v321 = vld [vmem:[#allocation5] sm:$0xff]
        %v322 = vld [vmem:[#allocation5 + $0x8] sm:$0xff]
        %v323 = vld [vmem:[#allocation5 + $0x10] sm:$0xff]
        %v324 = vld [vmem:[#allocation5 + $0x18] sm:$0xff]
        %v325 = vld [vmem:[#allocation5 + $0x20] sm:$0xff]
        %v326 = vld [vmem:[#allocation5 + $0x28] sm:$0xff]
        %v327 = vld [vmem:[#allocation5 + $0x30] sm:$0xff]
        %v328 = vld [vmem:[#allocation5 + $0x38] sm:$0xff]
        %v329 = vld [vmem:[#allocation5 + $0x40] sm:$0xff]
        %v330 = vld [vmem:[#allocation5 + $0x48] sm:$0xff]
        %v331 = vld [vmem:[#allocation5 + $0x50] sm:$0xff]
        %v332 = vld [vmem:[#allocation5 + $0x58] sm:$0xff]
        %v333 = vld [vmem:[#allocation5 + $0x60] sm:$0xff]
        %v334 = vld [vmem:[#allocation5 + $0x68] sm:$0xff]
        %v335 = vld [vmem:[#allocation5 + $0x70] sm:$0xff]
        %v336 = vld [vmem:[#allocation5 + $0x78] sm:$0xff]
        %v337 = vld [vmem:[%s315] sm:$0x3]
        %v339 = vlaneseq
        %v340 = vshrl.u32 %v339, 7
        %v341 = vsub.s32 0, %v340
        %v342 = vrot.slane %v337, %v341
        %v343 = vlaneseq
        %v344 = vshrl.u32 %v343, 7
        %v345 = vsub.s32 1, %v344
        %v346 = vrot.slane %v337, %v345
        %v365 = vunpack.c.l.b16 %v321
        %v366 = vunpack.c.h.b16 %v321
        %v367 = vunpack.c.l.b16 %v322
        %v368 = vunpack.c.h.b16 %v322
        %v369 = vunpack.c.l.b16 %v323
        %v370 = vunpack.c.h.b16 %v323
        %v371 = vunpack.c.l.b16 %v324
        %v372 = vunpack.c.h.b16 %v324
        %v373 = vunpack.c.l.b16 %v325
        %v374 = vunpack.c.h.b16 %v325
        %v375 = vunpack.c.l.b16 %v326
        %v376 = vunpack.c.h.b16 %v326
        %v377 = vunpack.c.l.b16 %v327
        %v378 = vunpack.c.h.b16 %v327
        %v379 = vunpack.c.l.b16 %v328
        %v380 = vunpack.c.h.b16 %v328
        %v381 = vunpack.c.l.b16 %v329
        %v382 = vunpack.c.h.b16 %v329
        %v383 = vunpack.c.l.b16 %v330
        %v384 = vunpack.c.h.b16 %v330
        %v385 = vunpack.c.l.b16 %v331
        %v386 = vunpack.c.h.b16 %v331
        %v387 = vunpack.c.l.b16 %v332
        %v388 = vunpack.c.h.b16 %v332
        %v389 = vunpack.c.l.b16 %v333
        %v390 = vunpack.c.h.b16 %v333
        %v391 = vunpack.c.l.b16 %v334
        %v392 = vunpack.c.h.b16 %v334
        %v393 = vunpack.c.l.b16 %v335
        %v394 = vunpack.c.h.b16 %v335
        %v395 = vunpack.c.l.b16 %v336
        %v396 = vunpack.c.h.b16 %v336
        %v397 = vpack.c.b16 %v367, %v365
        %v398 = vpack.c.b16 %v368, %v366
        %v399 = vpack.c.b16 %v371, %v369
        %v400 = vpack.c.b16 %v372, %v370
        %v401 = vpack.c.b16 %v375, %v373
        %v402 = vpack.c.b16 %v376, %v374
        %v403 = vpack.c.b16 %v379, %v377
        %v404 = vpack.c.b16 %v380, %v378
        %v405 = vpack.c.b16 %v383, %v381
        %v406 = vpack.c.b16 %v384, %v382
        %v407 = vpack.c.b16 %v387, %v385
        %v408 = vpack.c.b16 %v388, %v386
        %v409 = vpack.c.b16 %v391, %v389
        %v410 = vpack.c.b16 %v392, %v390
        %v411 = vpack.c.b16 %v395, %v393
        %v412 = vpack.c.b16 %v396, %v394
        %429 = vmatprep.subr.bf16.mxu0 %v398
        %430 = vmatpush1.bf16.msra.mxu0 %v397
        %431 = vmatprep.subr.bf16.mxu0 %v400
        %432 = vmatpush1.bf16.msra.mxu0 %v399
        %433 = vmatprep.subr.bf16.mxu0 %v402
        %434 = vmatpush1.bf16.msra.mxu0 %v401
        %435 = vmatprep.subr.bf16.mxu0 %v404
        %436 = vmatpush1.bf16.msra.mxu0 %v403
        %437 = vmatprep.subr.bf16.mxu0 %v406
        %438 = vmatpush1.bf16.msra.mxu0 %v405
        %439 = vmatprep.subr.bf16.mxu0 %v408
        %440 = vmatpush1.bf16.msra.mxu0 %v407
        %441 = vmatprep.subr.bf16.mxu0 %v410
        %442 = vmatpush1.bf16.msra.mxu0 %v409
        %443 = vmatprep.subr.bf16.mxu0 %v412
        %444 = vmatpush1.bf16.msra.mxu0 %v411
        %445 = vmatprep.subr.bf16.mxu0 0
        %446 = vmatpush1.bf16.msra.mxu0 0
        %447 = vmatprep.subr.bf16.mxu0 0
        %448 = vmatpush1.bf16.msra.mxu0 0
        %449 = vmatprep.subr.bf16.mxu0 0
        %450 = vmatpush1.bf16.msra.mxu0 0
        %451 = vmatprep.subr.bf16.mxu0 0
        %452 = vmatpush1.bf16.msra.mxu0 0
        %453 = vmatprep.subr.bf16.mxu0 0
        %454 = vmatpush1.bf16.msra.mxu0 0
        %455 = vmatprep.subr.bf16.mxu0 0
        %456 = vmatpush1.bf16.msra.mxu0 0
        %457 = vmatprep.subr.bf16.mxu0 0
        %458 = vmatpush1.bf16.msra.mxu0 0
        %459 = vmatprep.subr.bf16.mxu0 0
        %460 = vmatpush1.bf16.msra.mxu0 0
        %461 = vmatprep.mubr.bf16.mxu0 0
        %462 = vmatmul.mubr.bf16.gmra.mrb[0].mxu0 %v320
        %v463 = vpop.f32.mrb[0].mxu0
        %v464 = vadd.f32 %v342, %v463
        %v465 = vpop.f32.mrb[0].mxu0
        %v466 = vadd.f32 %v346, %v465
        %v467 = vpop.f32.mrb[0].mxu0
        %v468 = vpop.f32.mrb[0].mxu0
        %469 = vdwg.mxu0
        %v470 = vmax.f32 %v464, 0.0
        %v471 = vmax.f32 %v466, 0.0
        %v472 = vpack.c.bf16 %v470, %v470
        %v473 = vpack.c.bf16 %v471, %v471
        %v474 = vld [vmem:[#allocation7] sm:$0xf]
        %v475 = vld [vmem:[#allocation7 + $0x4] sm:$0xf]
        %v476 = vld [vmem:[#allocation7 + $0x8] sm:$0xf]
        %v477 = vld [vmem:[#allocation7 + $0xc] sm:$0xf]
        %v478 = vld [vmem:[#allocation7 + $0x10] sm:$0xf]
        %v479 = vld [vmem:[#allocation7 + $0x14] sm:$0xf]
        %v480 = vld [vmem:[#allocation7 + $0x18] sm:$0xf]
        %v481 = vld [vmem:[#allocation7 + $0x1c] sm:$0xf]
        %v482 = vld [vmem:[#allocation7 + $0x20] sm:$0xf]
        %v483 = vld [vmem:[#allocation7 + $0x24] sm:$0xf]
        %v484 = vld [vmem:[#allocation7 + $0x28] sm:$0xf]
        %v485 = vld [vmem:[#allocation7 + $0x2c] sm:$0xf]
        %v486 = vld [vmem:[#allocation7 + $0x30] sm:$0xf]
        %v487 = vld [vmem:[#allocation7 + $0x34] sm:$0xf]
        %v488 = vld [vmem:[#allocation7 + $0x38] sm:$0xf]
        %v489 = vld [vmem:[#allocation7 + $0x3c] sm:$0xf]
        %v490 = vld [vmem:[#allocation7 + $0x40] sm:$0xf]
        %v491 = vld [vmem:[#allocation7 + $0x44] sm:$0xf]
        %v492 = vld [vmem:[#allocation7 + $0x48] sm:$0xf]
        %v493 = vld [vmem:[#allocation7 + $0x4c] sm:$0xf]
        %v494 = vld [vmem:[#allocation7 + $0x50] sm:$0xf]
        %v495 = vld [vmem:[#allocation7 + $0x54] sm:$0xf]
        %v496 = vld [vmem:[#allocation7 + $0x58] sm:$0xf]
        %v497 = vld [vmem:[#allocation7 + $0x5c] sm:$0xf]
        %v498 = vld [vmem:[#allocation7 + $0x60] sm:$0xf]
        %v499 = vld [vmem:[#allocation7 + $0x64] sm:$0xf]
        %v500 = vld [vmem:[#allocation7 + $0x68] sm:$0xf]
        %v501 = vld [vmem:[#allocation7 + $0x6c] sm:$0xf]
        %v502 = vld [vmem:[#allocation7 + $0x70] sm:$0xf]
        %v503 = vld [vmem:[#allocation7 + $0x74] sm:$0xf]
        %v504 = vld [vmem:[#allocation7 + $0x78] sm:$0xf]
        %v505 = vld [vmem:[#allocation7 + $0x7c] sm:$0xf]
        %v538 = vunpack.c.l.b16 %v474
        %v539 = vunpack.c.l.b16 %v475
        %v540 = vunpack.c.l.b16 %v476
        %v541 = vunpack.c.l.b16 %v477
        %v542 = vunpack.c.l.b16 %v478
        %v543 = vunpack.c.l.b16 %v479
        %v544 = vunpack.c.l.b16 %v480
        %v545 = vunpack.c.l.b16 %v481
        %v546 = vunpack.c.l.b16 %v482
        %v547 = vunpack.c.l.b16 %v483
        %v548 = vunpack.c.l.b16 %v484
        %v549 = vunpack.c.l.b16 %v485
        %v550 = vunpack.c.l.b16 %v486
        %v551 = vunpack.c.l.b16 %v487
        %v552 = vunpack.c.l.b16 %v488
        %v553 = vunpack.c.l.b16 %v489
        %v554 = vunpack.c.l.b16 %v490
        %v555 = vunpack.c.l.b16 %v491
        %v556 = vunpack.c.l.b16 %v492
        %v557 = vunpack.c.l.b16 %v493
        %v558 = vunpack.c.l.b16 %v494
        %v559 = vunpack.c.l.b16 %v495
        %v560 = vunpack.c.l.b16 %v496
        %v561 = vunpack.c.l.b16 %v497
        %v562 = vunpack.c.l.b16 %v498
        %v563 = vunpack.c.l.b16 %v499
        %v564 = vunpack.c.l.b16 %v500
        %v565 = vunpack.c.l.b16 %v501
        %v566 = vunpack.c.l.b16 %v502
        %v567 = vunpack.c.l.b16 %v503
        %v568 = vunpack.c.l.b16 %v504
        %v569 = vunpack.c.l.b16 %v505
        %v570 = vpack.c.b16 %v539, %v538
        %v571 = vpack.c.b16 %v541, %v540
        %v572 = vpack.c.b16 %v543, %v542
        %v573 = vpack.c.b16 %v545, %v544
        %v574 = vpack.c.b16 %v547, %v546
        %v575 = vpack.c.b16 %v549, %v548
        %v576 = vpack.c.b16 %v551, %v550
        %v577 = vpack.c.b16 %v553, %v552
        %v578 = vpack.c.b16 %v555, %v554
        %v579 = vpack.c.b16 %v557, %v556
        %v580 = vpack.c.b16 %v559, %v558
        %v581 = vpack.c.b16 %v561, %v560
        %v582 = vpack.c.b16 %v563, %v562
        %v583 = vpack.c.b16 %v565, %v564
        %v584 = vpack.c.b16 %v567, %v566
        %v585 = vpack.c.b16 %v569, %v568
        %602 = vmatprep.subr.bf16.mxu0 0
        %603 = vmatpush1.bf16.msra.mxu0 %v570
        %604 = vmatprep.subr.bf16.mxu0 0
        %605 = vmatpush1.bf16.msra.mxu0 %v571
        %606 = vmatprep.subr.bf16.mxu0 0
        %607 = vmatpush1.bf16.msra.mxu0 %v572
        %608 = vmatprep.subr.bf16.mxu0 0
        %609 = vmatpush1.bf16.msra.mxu0 %v573
        %610 = vmatprep.subr.bf16.mxu0 0
        %611 = vmatpush1.bf16.msra.mxu0 %v574
        %612 = vmatprep.subr.bf16.mxu0 0
        %613 = vmatpush1.bf16.msra.mxu0 %v575
        %614 = vmatprep.subr.bf16.mxu0 0
        %615 = vmatpush1.bf16.msra.mxu0 %v576
        %616 = vmatprep.subr.bf16.mxu0 0
        %617 = vmatpush1.bf16.msra.mxu0 %v577
        %618 = vmatprep.subr.bf16.mxu0 0
        %619 = vmatpush1.bf16.msra.mxu0 %v578
        %620 = vmatprep.subr.bf16.mxu0 0
        %621 = vmatpush1.bf16.msra.mxu0 %v579
        %622 = vmatprep.subr.bf16.mxu0 0
        %623 = vmatpush1.bf16.msra.mxu0 %v580
        %624 = vmatprep.subr.bf16.mxu0 0
        %625 = vmatpush1.bf16.msra.mxu0 %v581
        %626 = vmatprep.subr.bf16.mxu0 0
        %627 = vmatpush1.bf16.msra.mxu0 %v582
        %628 = vmatprep.subr.bf16.mxu0 0
        %629 = vmatpush1.bf16.msra.mxu0 %v583
        %630 = vmatprep.subr.bf16.mxu0 0
        %631 = vmatpush1.bf16.msra.mxu0 %v584
        %632 = vmatprep.subr.bf16.mxu0 0
        %633 = vmatpush1.bf16.msra.mxu0 %v585
        %634 = vmatprep.mubr.bf16.mxu0 %v473
        %635 = vmatmul.mubr.bf16.gmra.mrb[0].mxu0 %v472
        %v636 = vpop.f32.mrb[0].mxu0
        %v637 = vadd.f32 0.0, %v636
        %v638 = vpop.f32.mrb[0].mxu0
        %v639 = vpop.f32.mrb[0].mxu0
        %v640 = vpop.f32.mrb[0].mxu0
        %641 = vdwg.mxu0
        %v642 = vld [vmem:[%s4] sm:$0x1]
        %v643 = vld [vmem:[%s4 + $0x1] sm:$0x1]
        %v644 = vld [vmem:[%s4 + $0x2] sm:$0x1]
        %v645 = vadd.f32 %v319, %v637
        %v646 = vlaneseq
        %v647 = vshrl.u32 %v646, 7
        %v648 = vsub.s32 0, %v647
        %v649 = vrot.slane %v642, %v648
        %v650 = vadd.f32 %v645, %v649
        %651 = vadd.xlane.f32.xlu0 %v650
        %v652 = vpop.xlane.xlu0 %651
        %v653 = vmul.f32 %v652, 0.015625
        %v654 = vsub.f32 %v650, %v653
        %v655 = vlaneseq
        %v656 = vand.u32 %v655, 127
        %vm657 = vcmp.lt.s32.totalorder %v656, 64
        %v658 = vsel %vm657, %v654, 0.0
        %v659 = vmul.f32 %v658, %v658
        %660 = vadd.xlane.f32.xlu0 %v659
        %v661 = vpop.xlane.xlu0 %660
        %v662 = vmul.f32 %v661, 0.015625
        %v663 = vadd.f32 %v662, 1e-05
        %v664 = vrsqrt.pop %v663
        %v665 = vmul.f32 %v654, %v664
        %v666 = vlaneseq
        %v667 = vshrl.u32 %v666, 7
        %v668 = vsub.s32 0, %v667
        %v669 = vrot.slane %v643, %v668
        %v670 = vmul.f32 %v665, %v669
        %v671 = vlaneseq
        %v672 = vshrl.u32 %v671, 7
        %v673 = vsub.s32 0, %v672
        %v674 = vrot.slane %v644, %v673
        %v675 = vadd.f32 %v670, %v674
        %676 = vst [vmem:[%s310] sm:$0xff] %v675
        %s677 = sand.u32 %s168, 1
        %s678 = scalar_lea.sflag [#allocation4], %s677
        %s679 = sand.u32 %s168, 1
        %s680 = smul.addr %s679, 8
        %s681 = scalar_lea.vmem [#allocation8], %s680
        // Predicated region
        $region53: #{tpu_custom_call.1} parent=39 // pred_check
          %p682 = pneg %p178
        $region54: #{tpu_custom_call.1} parent=39 // pred_check_branch
          %684 = sbr.rel (%p682) target = $region56
        $region55: #{tpu_custom_call.1} parent=39 // pred_region
          %s686 = ssub.s32 128, 128
          %687 = vsyncadd %s678, %s686
          %s688 = smul.addr %s27, 128
          %s689 = scalar_lea.hbm %s5, %s688
          %s691 = sshll.u32 %s681, 4
          %s692 = int_to_ptr.vmem [resolvable:$true] %s691
          %694 = dma.vmem_to_hbm [thread:$0]  %s692, 128, %s689, %s678
        $region56: #{tpu_custom_call.1} parent=39 // pred_fallthru
          _
      $region40: #{tpu_custom_call.1} parent=5 // pred_fallthru
        _
      %p695 = scmp.le.s32.totalorder 2, %s18
      // Predicated region
      $region57: #{tpu_custom_call.1} parent=5 // pred_check
        %p696 = pneg %p695
      $region58: #{tpu_custom_call.1} parent=5 // pred_check_branch
        %698 = sbr.rel (%p696) target = $region60
      $region59: #{tpu_custom_call.1} parent=5 // pred_region
        %s699 = ssub.s32 %s18, 2
        // Predicated region
        $region61: #{tpu_custom_call.1} parent=59 // pred_check
          %p700 = pneg %p184
        $region62: #{tpu_custom_call.1} parent=59 // pred_check_branch
          %702 = sbr.rel (%p700) target = $region64
        $region63: #{tpu_custom_call.1} parent=59 // pred_region
          %s703 = sand.u32 %s169, 1
          %s704 = scalar_lea.sflag [#allocation4], %s703
          %s705 = sand.u32 %s169, 1
          %s706 = smul.addr %s705, 8
          %s707 = scalar_lea.vmem [#allocation8], %s706
          %708 = dma.done %s704, 128
        $region64: #{tpu_custom_call.1} parent=59 // pred_fallthru
          _
      $region60: #{tpu_custom_call.1} parent=5 // pred_fallthru
        _
    $region6: #{tpu_custom_call.1} parent=1 // loop_footer
      %s22 = sadd.s32 1, %s18
    $region7: #{tpu_custom_call.1} parent=1 // loop_footer_branch
      %17 = sbr.rel target = $region3
    $region8: #{tpu_custom_call.1} parent=1 // loop_exit
      _
    %709 = vsyncpa [#allocation3], 1
    %s710 = scalar_lea.sflag [#allocation3], 1
    %711 = vsyncpa %s710, 1
    %712 = vsyncpa [#allocation6], 1
    %713 = vsyncpa [#allocation4], 1
    %s714 = scalar_lea.sflag [#allocation4], 1
    %715 = vsyncpa %s714, 1

</llo_original>
